<compile_context>
chip_gen: v7x
topology: tpu7x:2x2x1
jax: 0.10.0
libtpu: 0.0.40
codegen_flags: <defaults>
</compile_context>

<pallas_src>
import math

import jax
import jax.numpy as jnp
from jax.experimental import pallas as pl
from jax.experimental.pallas import tpu as pltpu

_A_MIN = 1e-30


def _round_up(a: int, b: int) -> int:
    return (a + b - 1) // b * b


def _epilogue(dist, gammas, inv_n_sigma, out_dtype):
    """clamp -> mean_s exp(-gamma_s * dist), sigma loop statically unrolled."""
    dist = jnp.maximum(dist, _A_MIN)                 # clamp_min(1e-30)
    kmat = jnp.exp(-gammas[0] * dist)                # EUP
    for g in gammas[1:]:
        kmat = kmat + jnp.exp(-g * dist)
    return (kmat * inv_n_sigma).astype(out_dtype)


def _make_single_k_kernel(gammas):
    """2-D grid (i, j): whole feature dim in one block, no accumulation."""
    inv_n = 1.0 / float(len(gammas))

    def kernel(x_ref, yt_ref, x2_ref, y2_ref, o_ref):
        xy = jnp.dot(x_ref[...], yt_ref[...], preferred_element_type=jnp.float32)
        dist = x2_ref[...] + y2_ref[...] - 2.0 * xy
        o_ref[...] = _epilogue(dist, gammas, inv_n, o_ref.dtype)

    return kernel


def _make_multi_k_kernel(gammas):
    """3-D grid (i, j, k): accumulate x@yT into the resident o_ref block."""
    inv_n = 1.0 / float(len(gammas))

    def kernel(x_ref, yt_ref, x2_ref, y2_ref, o_ref):
        k = pl.program_id(2)
        xy = jnp.dot(x_ref[...], yt_ref[...], preferred_element_type=jnp.float32)

        @pl.when(k == 0)
        def _():                       # first partial: plain store (no zero-fill pass)
            o_ref[...] = xy

        @pl.when(k > 0)
        def _():                       # only per-step op on o_ref -> MXU accumulate
            o_ref[...] += xy

        @pl.when(k == pl.num_programs(2) - 1)
        def _():
            dist = x2_ref[...] + y2_ref[...] - 2.0 * o_ref[...]
            o_ref[...] = _epilogue(dist, gammas, inv_n, o_ref.dtype)

    return kernel


def _select_tiles(Nx: int, Ny: int, F: int):
    """Generation-aware tile sizes and VMEM limit cap."""
    try:
        vmem_cap = int(pltpu.get_tpu_info().vmem_capacity_bytes)
    except Exception:
        vmem_cap = 64 * 2**20          # conservative (v7x-sized) fallback

    tile_budget = int(vmem_cap * 0.45)   # double-buffered tile footprint target
    limit_cap = int(vmem_cap * 0.75)     # hard cap for vmem_limit_bytes

    tm = min(1024, _round_up(Nx, 8))
    tn = min(1024, _round_up(Ny, 128))

    # Megacore / 2-TC (v7x): keep >= 2 output tiles in the (i, j) grid when we
    # can split without going below the (8, 128) minimum tile.
    if (_round_up(Nx, tm) // tm) * (_round_up(Ny, tn) // tn) == 1:
        if tm >= 16:
            tm = _round_up(tm // 2, 8)
        elif tn >= 256:
            tn = _round_up(tn // 2, 128)

    # Remaining budget -> reduction block tk (x and yT blocks double-buffered).
    fixed = 4 * (2 * tm * tn + 2 * tm * 128 + 2 * 8 * tn)   # out + x2 + y2 (padded)
    tk_max = (tile_budget - fixed) // (4 * 2 * (tm + tn))
    tk_max = max(128, (tk_max // 128) * 128)

    tk_full = _round_up(F, 128)
    if tk_full <= tk_full and tk_full <= tk_max:
        tk = tk_full                                   # collapse the k axis entirely
    else:
        nk = -(-tk_full // tk_max)                     # ceil
        tk = _round_up(-(-tk_full // nk), 128)         # balanced k blocks
    return tm, tn, tk, limit_cap


def gaussian_rbf_forward(x, y, sigma, *, use_bf16_matmul: bool = False,
                         tile_m: int | None = None, tile_n: int | None = None,
                         tile_k: int | None = None):
    """Pallas GaussianRBF.forward.

    x: [Nx, ...features...], y: [Ny, ...features...] (flattened like x.flatten(1)),
    sigma: list of floats (bandwidths). Optional tile_* override auto-tiling.
    """
    x = jnp.asarray(x, jnp.float32)
    y = jnp.asarray(y, jnp.float32)
    if x.ndim > 2:
        x = x.reshape(x.shape[0], -1)
    if y.ndim > 2:
        y = y.reshape(y.shape[0], -1)

    Nx, F = x.shape
    Ny, Fy = y.shape
    assert F == Fy, "x and y must have the same feature dimension"

    tm, tn, tk, limit_cap = _select_tiles(Nx, Ny, F)
    if tile_m is not None:
        tm = tile_m
    if tile_n is not None:
        tn = tile_n
    if tile_k is not None:
        tk = tile_k

    Nx_p = _round_up(Nx, tm)
    Ny_p = _round_up(Ny, tn)
    F_p = _round_up(F, tk)

    # Zero feature padding doesn't change dist; padded rows/cols are sliced off.
    x_p = jnp.pad(x, ((0, Nx_p - Nx), (0, F_p - F)))
    y_p = jnp.pad(y, ((0, Ny_p - Ny), (0, F_p - F)))

    # Row norms precomputed once here (one fused XLA pass each); the kernel no
    # longer re-reduces them for every (i, j, k) step.
    x2 = jnp.sum(x_p * x_p, axis=-1, keepdims=True)            # (Nx_p, 1)
    y2 = jnp.sum(y_p * y_p, axis=-1, keepdims=True).T          # (1, Ny_p) lane-dense

    # TODO(synk): contracting y's last dim in-kernel would save this one extra
    # HBM pass over y but risks a per-tile vxpose; keep the one-time transpose.
    yt_p = y_p.T                                                # (F_p, Ny_p)

    if use_bf16_matmul:   # optional fast path (~1e-3 rel err on the cross term)
        x_mm = x_p.astype(jnp.bfloat16)
        yt_mm = yt_p.astype(jnp.bfloat16)
    else:
        x_mm, yt_mm = x_p, yt_p

    # gamma = 1 / (2 * sigma^2) -- static parameters (sigma = exp(log_sigma)).
    gammas = tuple(1.0 / (2.0 * float(s) ** 2) for s in sigma)

    nk = F_p // tk
    footprint = 4 * (2 * tm * tk + 2 * tk * tn + 2 * tm * tn
                     + 2 * tm * 128 + 2 * 8 * tn)
    vmem_limit = int(min(limit_cap, max(32 * 2**20, footprint + 16 * 2**20)))

    if nk == 1:
        kernel = _make_single_k_kernel(gammas)
        grid = (Nx_p // tm, Ny_p // tn)
        in_specs = [
            pl.BlockSpec((tm, tk), lambda i, j: (i, 0)),    # x
            pl.BlockSpec((tk, tn), lambda i, j: (0, j)),    # y^T
            pl.BlockSpec((tm, 1), lambda i, j: (i, 0)),     # ||x||^2
            pl.BlockSpec((1, tn), lambda i, j: (0, j)),     # ||y||^2
        ]
        out_spec = pl.BlockSpec((tm, tn), lambda i, j: (i, j))
        dims = ("parallel", "parallel")
    else:
        kernel = _make_multi_k_kernel(gammas)
        grid = (Nx_p // tm, Ny_p // tn, nk)                 # reduction axis last
        in_specs = [
            pl.BlockSpec((tm, tk), lambda i, j, k: (i, k)),
            pl.BlockSpec((tk, tn), lambda i, j, k: (k, j)),
            pl.BlockSpec((tm, 1), lambda i, j, k: (i, 0)),
            pl.BlockSpec((1, tn), lambda i, j, k: (0, j)),
        ]
        out_spec = pl.BlockSpec((tm, tn), lambda i, j, k: (i, j))
        dims = ("parallel", "parallel", "arbitrary")

    out = pl.pallas_call(
        kernel,
        out_shape=jax.ShapeDtypeStruct((Nx_p, Ny_p), jnp.float32),
        grid_spec=pltpu.PrefetchScalarGridSpec(
            num_scalar_prefetch=0,
            grid=grid,
            in_specs=in_specs,
            out_specs=out_spec,
        ),
        compiler_params=pltpu.CompilerParams(
            dimension_semantics=dims,
            vmem_limit_bytes=vmem_limit,
        ),
    )(x_mm, yt_mm, x2, y2)

    return out[:Nx, :Ny]


def _reference(x, y, sigma):
    """Plain-JAX reference of the PyTorch forward (f32, highest precision)."""
    x = jnp.asarray(x, jnp.float32).reshape(x.shape[0], -1)
    y = jnp.asarray(y, jnp.float32).reshape(y.shape[0], -1)
    x2 = jnp.sum(x * x, axis=-1, keepdims=True)
    y2 = jnp.sum(y * y, axis=-1, keepdims=True)
    xy = jnp.dot(x, y.T, precision=jax.lax.Precision.HIGHEST)
    dist = jnp.maximum(x2 + y2.T - 2.0 * xy, _A_MIN)
    gammas = 1.0 / (2.0 * jnp.asarray(sigma, jnp.float32) ** 2)
    kmats = jnp.exp(-gammas[:, None, None] * dist[None, :, :])
    return jnp.mean(kmats, axis=0)


if __name__ == "__main__":
    key = jax.random.PRNGKey(0)
    kx, ky, ka, kb, kc, kd = jax.random.split(key, 6)

    # Deterministic parameter init: sigma values -> log_sigma parameter.
    sigma = [0.5, 1.0, 2.0]
    log_sigma = [math.log(s) for s in sigma]        # nn.Parameter equivalent
    sigma = [math.exp(ls) for ls in log_sigma]      # self.sigma property

    # Test 1: NCHW inputs flattened exactly like x.flatten(1) (single-k path).
    N, C, H, W = 2, 4, 16, 16
    x_nchw = 0.1 * jax.random.normal(kx, (N, C, H, W), dtype=jnp.float32)
    y_nchw = 0.1 * jax.random.normal(ky, (N, C, H, W), dtype=jnp.float32)
    out1 = jax.block_until_ready(gaussian_rbf_forward(x_nchw, y_nchw, sigma))
    ref1 = _reference(x_nchw, y_nchw, sigma)
    assert out1.shape == (N, N)
    assert jnp.allclose(out1, ref1, atol=1e-5, rtol=1e-4), "mismatch (test 1)"

    # Test 2: ragged [N, F] shapes (exercise padding on every axis).
    xa = 0.1 * jax.random.normal(ka, (10, 200), dtype=jnp.float32)
    yb = 0.1 * jax.random.normal(kb, (6, 200), dtype=jnp.float32)
    out2 = jax.block_until_ready(gaussian_rbf_forward(xa, yb, sigma))
    ref2 = _reference(xa, yb, sigma)
    assert out2.shape == (10, 6)
    assert jnp.allclose(out2, ref2, atol=1e-5, rtol=1e-4), "mismatch (test 2)"

    # Test 3: force the multi-k accumulation path + multi-tile (i, j) grid.
    xc = 0.1 * jax.random.normal(kc, (24, 384), dtype=jnp.float32)
    yd = 0.1 * jax.random.normal(kd, (40, 384), dtype=jnp.float32)
    out3 = jax.block_until_ready(
        gaussian_rbf_forward(xc, yd, sigma, tile_m=16, tile_n=128, tile_k=128))
    ref3 = _reference(xc, yd, sigma)
    assert out3.shape == (24, 40)
    assert jnp.allclose(out3, ref3, atol=1e-5, rtol=1e-4), "mismatch (test 3)"

    print("KERNEL_OK")
</pallas_src>

<mosaic_0001>
module attributes {stable_mosaic.version = 11 : i64} {
  func.func @kernel(%arg0: i32, %arg1: i32, %arg2: memref<8x1024xf32, #tpu.memory_space<vmem>>, %arg3: memref<1024x128xf32, #tpu.memory_space<vmem>>, %arg4: memref<8x1xf32, #tpu.memory_space<vmem>>, %arg5: memref<1x128xf32, #tpu.memory_space<vmem>>, %arg6: memref<8x128xf32, #tpu.memory_space<vmem>>) attributes {dimension_semantics = [#tpu.dimension_semantics<parallel>, #tpu.dimension_semantics<parallel>], iteration_bounds = array<i64: 1, 1>, scalar_prefetch = 0 : i64, scratch_operands = 0 : i64, tpu.core_type = #tpu.core_type<tc>, window_params = [{transform_indices = @transform_0, window_bounds = array<i64: 8, 1024>}, {transform_indices = @transform_1, window_bounds = array<i64: 1024, 128>}, {transform_indices = @transform_2, window_bounds = array<i64: 8, 1>}, {transform_indices = @transform_3, window_bounds = array<i64: 1, 128>}, {transform_indices = @transform_4, window_bounds = array<i64: 8, 128>}]} {
    %c0 = arith.constant 0 : index
    %c0_0 = arith.constant 0 : index
    %0 = vector.load %arg2[%c0, %c0_0] : memref<8x1024xf32, #tpu.memory_space<vmem>>, vector<8x1024xf32>
    %c0_1 = arith.constant 0 : index
    %c0_2 = arith.constant 0 : index
    %1 = vector.load %arg3[%c0_1, %c0_2] : memref<1024x128xf32, #tpu.memory_space<vmem>>, vector<1024x128xf32>
    %cst = arith.constant dense<0.000000e+00> : vector<8x128xf32>
    %2 = tpu.matmul %0, %1, %cst {dimension_numbers = #tpu.dot_dimension_numbers<[1], [0], [0], [1], [0, 0, 1, 1], [], []>} : vector<8x1024xf32>, vector<1024x128xf32>, vector<8x128xf32> -> vector<8x128xf32>
    %c0_3 = arith.constant 0 : index
    %c0_4 = arith.constant 0 : index
    %3 = vector.load %arg4[%c0_3, %c0_4] : memref<8x1xf32, #tpu.memory_space<vmem>>, vector<8x1xf32>
    %c0_5 = arith.constant 0 : index
    %c0_6 = arith.constant 0 : index
    %4 = vector.load %arg5[%c0_5, %c0_6] : memref<1x128xf32, #tpu.memory_space<vmem>>, vector<1x128xf32>
    %5 = vector.broadcast %3 : vector<8x1xf32> to vector<8x128xf32>
    %6 = vector.broadcast %4 : vector<1x128xf32> to vector<8x128xf32>
    %7 = arith.addf %5, %6 : vector<8x128xf32>
    %cst_7 = arith.constant 2.000000e+00 : f32
    %8 = vector.broadcast %cst_7 : f32 to vector<8x128xf32>
    %9 = arith.mulf %8, %2 : vector<8x128xf32>
    %10 = arith.subf %7, %9 : vector<8x128xf32>
    %cst_8 = arith.constant 1.000000e-30 : f32
    %11 = vector.broadcast %cst_8 : f32 to vector<8x128xf32>
    %12 = arith.maximumf %10, %11 : vector<8x128xf32>
    %cst_9 = arith.constant -2.000000e+00 : f32
    %13 = vector.broadcast %cst_9 : f32 to vector<8x128xf32>
    %14 = arith.mulf %13, %12 : vector<8x128xf32>
    %15 = math.exp %14 : vector<8x128xf32>
    %cst_10 = arith.constant -5.000000e-01 : f32
    %16 = vector.broadcast %cst_10 : f32 to vector<8x128xf32>
    %17 = arith.mulf %16, %12 : vector<8x128xf32>
    %18 = math.exp %17 : vector<8x128xf32>
    %19 = arith.addf %15, %18 : vector<8x128xf32>
    %cst_11 = arith.constant -1.250000e-01 : f32
    %20 = vector.broadcast %cst_11 : f32 to vector<8x128xf32>
    %21 = arith.mulf %20, %12 : vector<8x128xf32>
    %22 = math.exp %21 : vector<8x128xf32>
    %23 = arith.addf %19, %22 : vector<8x128xf32>
    %cst_12 = arith.constant 0.333333343 : f32
    %24 = vector.broadcast %cst_12 : f32 to vector<8x128xf32>
    %25 = arith.mulf %23, %24 : vector<8x128xf32>
    %c0_13 = arith.constant 0 : index
    %c0_14 = arith.constant 0 : index
    %26 = vector.load %arg6[%c0_13, %c0_14] : memref<8x128xf32, #tpu.memory_space<vmem>>, vector<8x128xf32>
    tpu.vector_store %arg6[%c0_13, %c0_14], %25 {strides = array<i32>} : memref<8x128xf32, #tpu.memory_space<vmem>>, vector<8x128xf32>,
    return
  }
  func.func @transform_0(%arg0: i32, %arg1: i32) -> (i32, i32) {
    %c0_i32 = arith.constant 0 : i32
    %c0_i32_0 = arith.constant 0 : i32
    return %arg0, %c0_i32 : i32, i32
  }
  func.func @transform_1(%arg0: i32, %arg1: i32) -> (i32, i32) {
    %c0_i32 = arith.constant 0 : i32
    %c0_i32_0 = arith.constant 0 : i32
    return %c0_i32, %arg1 : i32, i32
  }
  func.func @transform_2(%arg0: i32, %arg1: i32) -> (i32, i32) {
    %c0_i32 = arith.constant 0 : i32
    %c0_i32_0 = arith.constant 0 : i32
    return %arg0, %c0_i32 : i32, i32
  }
  func.func @transform_3(%arg0: i32, %arg1: i32) -> (i32, i32) {
    %c0_i32 = arith.constant 0 : i32
    %c0_i32_0 = arith.constant 0 : i32
    return %c0_i32, %arg1 : i32, i32
  }
  func.func @transform_4(%arg0: i32, %arg1: i32) -> (i32, i32) {
    %c0_i32 = arith.constant 0 : i32
    return %arg0, %arg1 : i32, i32
  }
}

</mosaic_0001>

<llo_original>
// kernel: tpu_custom_call.1
$region0: #{tpu_custom_call.1}
  #allocation0 [shape = 'u32[]', space=smem, size = 0x4, offset = 0x4, fixed_abs, tag = 'smem constant byte address 0x4 - core index']
  #allocation1 [shape = 'u32[144,128]{1,0:T(1,128)}', space=vmem, size = 0x12000, scoped, tag = 'internal scratch']
  %s0 = inlined_call_operand.hbm [shape: f32[8,1024], index: 0, kind: input, shape index: {}]
  %s1 = inlined_call_operand.hbm [shape: f32[1024,128], index: 1, kind: input, shape index: {}]
  %s2 = inlined_call_operand.vmem [shape: f32[8,1], index: 2, kind: input, shape index: {}]
  %s3 = inlined_call_operand.vmem [shape: f32[1,128], index: 3, kind: input, shape index: {}]
  %s4 = inlined_call_operand.hbm [shape: f32[8,128], index: 4, kind: output, shape index: {}]
  %s5 = sld [smem:[#allocation0]]
  $region34: #{tpu_custom_call.1} parent=0
    _
  %s7 = ssub.s32 1, %s5
  %s8 = scalar_select 0, %s7, %s5
  $region1: #{tpu_custom_call.1} parent=0
    #allocation2 [shape = 'u8[32768]{0}', space=vmem, size = 0x8000, scoped, tag = 'input window, operand 0, single buffered']
    #allocation3 [shape = 's32[1]{0}', space=sflag, size = 0x4, scoped, tag = 'scoped memory for tpu_custom_call.1']
    #allocation4 [shape = 's32[1]{0}', space=sflag, size = 0x4, scoped, tag = 'scoped memory for tpu_custom_call.1']
    #allocation5 [shape = 'u8[524288]{0}', space=vmem, size = 0x80000, scoped, tag = 'input window, operand 1, single buffered']
    #allocation6 [shape = 's32[1]{0}', space=sflag, size = 0x4, scoped, tag = 'scoped memory for tpu_custom_call.1']
    #allocation7 [shape = 'u8[4096]{0}', space=vmem, size = 0x1000, scoped, tag = 'output window, operand 0, single buffered']
    %9 = vsyncpa [#allocation3], 0
    %10 = vsyncpa [#allocation6], 0
    %11 = vsyncpa [#allocation4], 0
    // Predicated region
    $region2: #{tpu_custom_call.1} parent=1 // pred_check
      _
    $region3: #{tpu_custom_call.1} parent=1 // pred_check_branch
      %13 = sbr.rel (0) target = $region5
    $region4: #{tpu_custom_call.1} parent=1 // pred_region
      %s15 = ssub.s32 1024, 1024
      %16 = vsyncadd [#allocation3], %s15
      %s18 = sshll.u32 [#allocation2], 4
      %s19 = int_to_ptr.vmem [resolvable:$true] %s18
      %21 = dma.hbm_to_vmem [thread:$0]  %s0, 1024, %s19, [#allocation3]
    $region5: #{tpu_custom_call.1} parent=1 // pred_fallthru
      _
    // Predicated region
    $region6: #{tpu_custom_call.1} parent=1 // pred_check
      _
    $region7: #{tpu_custom_call.1} parent=1 // pred_check_branch
      %23 = sbr.rel (0) target = $region9
    $region8: #{tpu_custom_call.1} parent=1 // pred_region
      %s25 = ssub.s32 16384, 16384
      %26 = vsyncadd [#allocation6], %s25
      %s27 = sshll.u32 [#allocation5], 4
      %s28 = int_to_ptr.vmem [resolvable:$true] %s27
      %33 = dma.hbm_to_vmem [thread:$0]  %s1, 16384, %s28, [#allocation6], 128, 128, 8
    $region9: #{tpu_custom_call.1} parent=1 // pred_fallthru
      _
    // Predicated region
    $region10: #{tpu_custom_call.1} parent=1 // pred_check
      _
    $region11: #{tpu_custom_call.1} parent=1 // pred_check_branch
      %35 = sbr.rel (0) target = $region13
    $region12: #{tpu_custom_call.1} parent=1 // pred_region
      _
    $region13: #{tpu_custom_call.1} parent=1 // pred_fallthru
      _
    // Predicated region
    $region14: #{tpu_custom_call.1} parent=1 // pred_check
      _
    $region15: #{tpu_custom_call.1} parent=1 // pred_check_branch
      %37 = sbr.rel (0) target = $region17
    $region16: #{tpu_custom_call.1} parent=1 // pred_region
      _
    $region17: #{tpu_custom_call.1} parent=1 // pred_fallthru
      _
    // Predicated region
    $region18: #{tpu_custom_call.1} parent=1 // pred_check
      _
    $region19: #{tpu_custom_call.1} parent=1 // pred_check_branch
      %39 = sbr.rel (0) target = $region21
    $region20: #{tpu_custom_call.1} parent=1 // pred_region
      %40 = dma.done [#allocation3], 1024
    $region21: #{tpu_custom_call.1} parent=1 // pred_fallthru
      _
    // Predicated region
    $region22: #{tpu_custom_call.1} parent=1 // pred_check
      _
    $region23: #{tpu_custom_call.1} parent=1 // pred_check_branch
      %42 = sbr.rel (0) target = $region25
    $region24: #{tpu_custom_call.1} parent=1 // pred_region
      %43 = dma.done [#allocation6], 16384
    $region25: #{tpu_custom_call.1} parent=1 // pred_fallthru
      _
    %v44 = vld [vmem:[#allocation2] sm:$0xff]
    %v45 = vld [vmem:[#allocation2 + $0x8] sm:$0xff]
    %v46 = vld [vmem:[#allocation2 + $0x10] sm:$0xff]
    %v47 = vld [vmem:[#allocation2 + $0x18] sm:$0xff]
    %v48 = vld [vmem:[#allocation2 + $0x20] sm:$0xff]
    %v49 = vld [vmem:[#allocation2 + $0x28] sm:$0xff]
    %v50 = vld [vmem:[#allocation2 + $0x30] sm:$0xff]
    %v51 = vld [vmem:[#allocation2 + $0x38] sm:$0xff]
    %v52 = vld [vmem:[#allocation5] sm:$0xff]
    %v53 = vld [vmem:[#allocation5 + $0x8] sm:$0xff]
    %v54 = vld [vmem:[#allocation5 + $0x10] sm:$0xff]
    %v55 = vld [vmem:[#allocation5 + $0x18] sm:$0xff]
    %v56 = vld [vmem:[#allocation5 + $0x20] sm:$0xff]
    %v57 = vld [vmem:[#allocation5 + $0x28] sm:$0xff]
    %v58 = vld [vmem:[#allocation5 + $0x30] sm:$0xff]
    %v59 = vld [vmem:[#allocation5 + $0x38] sm:$0xff]
    %v60 = vld [vmem:[#allocation5 + $0x40] sm:$0xff]
    %v61 = vld [vmem:[#allocation5 + $0x48] sm:$0xff]
    %v62 = vld [vmem:[#allocation5 + $0x50] sm:$0xff]
    %v63 = vld [vmem:[#allocation5 + $0x58] sm:$0xff]
    %v64 = vld [vmem:[#allocation5 + $0x60] sm:$0xff]
    %v65 = vld [vmem:[#allocation5 + $0x68] sm:$0xff]
    %v66 = vld [vmem:[#allocation5 + $0x70] sm:$0xff]
    %v67 = vld [vmem:[#allocation5 + $0x78] sm:$0xff]
    %v68 = vld [vmem:[#allocation5 + $0x80] sm:$0xff]
    %v69 = vld [vmem:[#allocation5 + $0x88] sm:$0xff]
    %v70 = vld [vmem:[#allocation5 + $0x90] sm:$0xff]
    %v71 = vld [vmem:[#allocation5 + $0x98] sm:$0xff]
    %v72 = vld [vmem:[#allocation5 + $0xa0] sm:$0xff]
    %v73 = vld [vmem:[#allocation5 + $0xa8] sm:$0xff]
    %v74 = vld [vmem:[#allocation5 + $0xb0] sm:$0xff]
    %v75 = vld [vmem:[#allocation5 + $0xb8] sm:$0xff]
    %v76 = vld [vmem:[#allocation5 + $0xc0] sm:$0xff]
    %v77 = vld [vmem:[#allocation5 + $0xc8] sm:$0xff]
    %v78 = vld [vmem:[#allocation5 + $0xd0] sm:$0xff]
    %v79 = vld [vmem:[#allocation5 + $0xd8] sm:$0xff]
    %v80 = vld [vmem:[#allocation5 + $0xe0] sm:$0xff]
    %v81 = vld [vmem:[#allocation5 + $0xe8] sm:$0xff]
    %v82 = vld [vmem:[#allocation5 + $0xf0] sm:$0xff]
    %v83 = vld [vmem:[#allocation5 + $0xf8] sm:$0xff]
    %v84 = vld [vmem:[#allocation5 + $0x100] sm:$0xff]
    %v85 = vld [vmem:[#allocation5 + $0x108] sm:$0xff]
    %v86 = vld [vmem:[#allocation5 + $0x110] sm:$0xff]
    %v87 = vld [vmem:[#allocation5 + $0x118] sm:$0xff]
    %v88 = vld [vmem:[#allocation5 + $0x120] sm:$0xff]
    %v89 = vld [vmem:[#allocation5 + $0x128] sm:$0xff]
    %v90 = vld [vmem:[#allocation5 + $0x130] sm:$0xff]
    %v91 = vld [vmem:[#allocation5 + $0x138] sm:$0xff]
    %v92 = vld [vmem:[#allocation5 + $0x140] sm:$0xff]
    %v93 = vld [vmem:[#allocation5 + $0x148] sm:$0xff]
    %v94 = vld [vmem:[#allocation5 + $0x150] sm:$0xff]
    %v95 = vld [vmem:[#allocation5 + $0x158] sm:$0xff]
    %v96 = vld [vmem:[#allocation5 + $0x160] sm:$0xff]
    %v97 = vld [vmem:[#allocation5 + $0x168] sm:$0xff]
    %v98 = vld [vmem:[#allocation5 + $0x170] sm:$0xff]
    %v99 = vld [vmem:[#allocation5 + $0x178] sm:$0xff]
    %v100 = vld [vmem:[#allocation5 + $0x180] sm:$0xff]
    %v101 = vld [vmem:[#allocation5 + $0x188] sm:$0xff]
    %v102 = vld [vmem:[#allocation5 + $0x190] sm:$0xff]
    %v103 = vld [vmem:[#allocation5 + $0x198] sm:$0xff]
    %v104 = vld [vmem:[#allocation5 + $0x1a0] sm:$0xff]
    %v105 = vld [vmem:[#allocation5 + $0x1a8] sm:$0xff]
    %v106 = vld [vmem:[#allocation5 + $0x1b0] sm:$0xff]
    %v107 = vld [vmem:[#allocation5 + $0x1b8] sm:$0xff]
    %v108 = vld [vmem:[#allocation5 + $0x1c0] sm:$0xff]
    %v109 = vld [vmem:[#allocation5 + $0x1c8] sm:$0xff]
    %v110 = vld [vmem:[#allocation5 + $0x1d0] sm:$0xff]
    %v111 = vld [vmem:[#allocation5 + $0x1d8] sm:$0xff]
    %v112 = vld [vmem:[#allocation5 + $0x1e0] sm:$0xff]
    %v113 = vld [vmem:[#allocation5 + $0x1e8] sm:$0xff]
    %v114 = vld [vmem:[#allocation5 + $0x1f0] sm:$0xff]
    %v115 = vld [vmem:[#allocation5 + $0x1f8] sm:$0xff]
    %v116 = vld [vmem:[#allocation5 + $0x200] sm:$0xff]
    %v117 = vld [vmem:[#allocation5 + $0x208] sm:$0xff]
    %v118 = vld [vmem:[#allocation5 + $0x210] sm:$0xff]
    %v119 = vld [vmem:[#allocation5 + $0x218] sm:$0xff]
    %v120 = vld [vmem:[#allocation5 + $0x220] sm:$0xff]
    %v121 = vld [vmem:[#allocation5 + $0x228] sm:$0xff]
    %v122 = vld [vmem:[#allocation5 + $0x230] sm:$0xff]
    %v123 = vld [vmem:[#allocation5 + $0x238] sm:$0xff]
    %v124 = vld [vmem:[#allocation5 + $0x240] sm:$0xff]
    %v125 = vld [vmem:[#allocation5 + $0x248] sm:$0xff]
    %v126 = vld [vmem:[#allocation5 + $0x250] sm:$0xff]
    %v127 = vld [vmem:[#allocation5 + $0x258] sm:$0xff]
    %v128 = vld [vmem:[#allocation5 + $0x260] sm:$0xff]
    %v129 = vld [vmem:[#allocation5 + $0x268] sm:$0xff]
    %v130 = vld [vmem:[#allocation5 + $0x270] sm:$0xff]
    %v131 = vld [vmem:[#allocation5 + $0x278] sm:$0xff]
    %v132 = vld [vmem:[#allocation5 + $0x280] sm:$0xff]
    %v133 = vld [vmem:[#allocation5 + $0x288] sm:$0xff]
    %v134 = vld [vmem:[#allocation5 + $0x290] sm:$0xff]
    %v135 = vld [vmem:[#allocation5 + $0x298] sm:$0xff]
    %v136 = vld [vmem:[#allocation5 + $0x2a0] sm:$0xff]
    %v137 = vld [vmem:[#allocation5 + $0x2a8] sm:$0xff]
    %v138 = vld [vmem:[#allocation5 + $0x2b0] sm:$0xff]
    %v139 = vld [vmem:[#allocation5 + $0x2b8] sm:$0xff]
    %v140 = vld [vmem:[#allocation5 + $0x2c0] sm:$0xff]
    %v141 = vld [vmem:[#allocation5 + $0x2c8] sm:$0xff]
    %v142 = vld [vmem:[#allocation5 + $0x2d0] sm:$0xff]
    %v143 = vld [vmem:[#allocation5 + $0x2d8] sm:$0xff]
    %v144 = vld [vmem:[#allocation5 + $0x2e0] sm:$0xff]
    %v145 = vld [vmem:[#allocation5 + $0x2e8] sm:$0xff]
    %v146 = vld [vmem:[#allocation5 + $0x2f0] sm:$0xff]
    %v147 = vld [vmem:[#allocation5 + $0x2f8] sm:$0xff]
    %v148 = vld [vmem:[#allocation5 + $0x300] sm:$0xff]
    %v149 = vld [vmem:[#allocation5 + $0x308] sm:$0xff]
    %v150 = vld [vmem:[#allocation5 + $0x310] sm:$0xff]
    %v151 = vld [vmem:[#allocation5 + $0x318] sm:$0xff]
    %v152 = vld [vmem:[#allocation5 + $0x320] sm:$0xff]
    %v153 = vld [vmem:[#allocation5 + $0x328] sm:$0xff]
    %v154 = vld [vmem:[#allocation5 + $0x330] sm:$0xff]
    %v155 = vld [vmem:[#allocation5 + $0x338] sm:$0xff]
    %v156 = vld [vmem:[#allocation5 + $0x340] sm:$0xff]
    %v157 = vld [vmem:[#allocation5 + $0x348] sm:$0xff]
    %v158 = vld [vmem:[#allocation5 + $0x350] sm:$0xff]
    %v159 = vld [vmem:[#allocation5 + $0x358] sm:$0xff]
    %v160 = vld [vmem:[#allocation5 + $0x360] sm:$0xff]
    %v161 = vld [vmem:[#allocation5 + $0x368] sm:$0xff]
    %v162 = vld [vmem:[#allocation5 + $0x370] sm:$0xff]
    %v163 = vld [vmem:[#allocation5 + $0x378] sm:$0xff]
    %v164 = vld [vmem:[#allocation5 + $0x380] sm:$0xff]
    %v165 = vld [vmem:[#allocation5 + $0x388] sm:$0xff]
    %v166 = vld [vmem:[#allocation5 + $0x390] sm:$0xff]
    %v167 = vld [vmem:[#allocation5 + $0x398] sm:$0xff]
    %v168 = vld [vmem:[#allocation5 + $0x3a0] sm:$0xff]
    %v169 = vld [vmem:[#allocation5 + $0x3a8] sm:$0xff]
    %v170 = vld [vmem:[#allocation5 + $0x3b0] sm:$0xff]
    %v171 = vld [vmem:[#allocation5 + $0x3b8] sm:$0xff]
    %v172 = vld [vmem:[#allocation5 + $0x3c0] sm:$0xff]
    %v173 = vld [vmem:[#allocation5 + $0x3c8] sm:$0xff]
    %v174 = vld [vmem:[#allocation5 + $0x3d0] sm:$0xff]
    %v175 = vld [vmem:[#allocation5 + $0x3d8] sm:$0xff]
    %v176 = vld [vmem:[#allocation5 + $0x3e0] sm:$0xff]
    %v177 = vld [vmem:[#allocation5 + $0x3e8] sm:$0xff]
    %v178 = vld [vmem:[#allocation5 + $0x3f0] sm:$0xff]
    %v179 = vld [vmem:[#allocation5 + $0x3f8] sm:$0xff]
    %180 = vmatprep.subr.mxu0 0.0
    %181 = vmatpush1.msra.mxu0 %v52
    %182 = vmatprep.subr.mxu0 0.0
    %183 = vmatpush1.msra.mxu0 %v53
    %184 = vmatprep.subr.mxu0 0.0
    %185 = vmatpush1.msra.mxu0 %v54
    %186 = vmatprep.subr.mxu0 0.0
    %187 = vmatpush1.msra.mxu0 %v55
    %188 = vmatprep.subr.mxu0 0.0
    %189 = vmatpush1.msra.mxu0 %v56
    %190 = vmatprep.subr.mxu0 0.0
    %191 = vmatpush1.msra.mxu0 %v57
    %192 = vmatprep.subr.mxu0 0.0
    %193 = vmatpush1.msra.mxu0 %v58
    %194 = vmatprep.subr.mxu0 0.0
    %195 = vmatpush1.msra.mxu0 %v59
    %196 = vmatprep.subr.mxu0 0.0
    %197 = vmatpush1.msra.mxu0 %v60
    %198 = vmatprep.subr.mxu0 0.0
    %199 = vmatpush1.msra.mxu0 %v61
    %200 = vmatprep.subr.mxu0 0.0
    %201 = vmatpush1.msra.mxu0 %v62
    %202 = vmatprep.subr.mxu0 0.0
    %203 = vmatpush1.msra.mxu0 %v63
    %204 = vmatprep.subr.mxu0 0.0
    %205 = vmatpush1.msra.mxu0 %v64
    %206 = vmatprep.subr.mxu0 0.0
    %207 = vmatpush1.msra.mxu0 %v65
    %208 = vmatprep.subr.mxu0 0.0
    %209 = vmatpush1.msra.mxu0 %v66
    %210 = vmatprep.subr.mxu0 0.0
    %211 = vmatpush1.msra.mxu0 %v67
    %212 = vmatprep.subr.mxu0 0.0
    %213 = vmatpush1.msra.mxu0 %v68
    %214 = vmatprep.subr.mxu0 0.0
    %215 = vmatpush1.msra.mxu0 %v69
    %216 = vmatprep.subr.mxu0 0.0
    %217 = vmatpush1.msra.mxu0 %v70
    %218 = vmatprep.subr.mxu0 0.0
    %219 = vmatpush1.msra.mxu0 %v71
    %220 = vmatprep.subr.mxu0 0.0
    %221 = vmatpush1.msra.mxu0 %v72
    %222 = vmatprep.subr.mxu0 0.0
    %223 = vmatpush1.msra.mxu0 %v73
    %224 = vmatprep.subr.mxu0 0.0
    %225 = vmatpush1.msra.mxu0 %v74
    %226 = vmatprep.subr.mxu0 0.0
    %227 = vmatpush1.msra.mxu0 %v75
    %228 = vmatprep.subr.mxu0 0.0
    %229 = vmatpush1.msra.mxu0 %v76
    %230 = vmatprep.subr.mxu0 0.0
    %231 = vmatpush1.msra.mxu0 %v77
    %232 = vmatprep.subr.mxu0 0.0
    %233 = vmatpush1.msra.mxu0 %v78
    %234 = vmatprep.subr.mxu0 0.0
    %235 = vmatpush1.msra.mxu0 %v79
    %236 = vmatprep.subr.mxu0 0.0
    %237 = vmatpush1.msra.mxu0 %v80
    %238 = vmatprep.subr.mxu0 0.0
    %239 = vmatpush1.msra.mxu0 %v81
    %240 = vmatprep.subr.mxu0 0.0
    %241 = vmatpush1.msra.mxu0 %v82
    %242 = vmatprep.subr.mxu0 0.0
    %243 = vmatpush1.msra.mxu0 %v83
    %244 = vmatprep.mubr.f32.mxu0 %v45
    %245 = vmatmul.mubr.f32.gmra.mrb[0].mxu0 %v44
    %v246 = vpop.f32.mrb[0].mxu0
    %v247 = vadd.f32 0.0, %v246
    %v248 = vpop.f32.mrb[0].mxu0
    %249 = vdwg.mxu0
    %250 = vmatprep.subr.mxu0 0.0
    %251 = vmatpush1.msra.mxu0 %v84
    %252 = vmatprep.subr.mxu0 0.0
    %253 = vmatpush1.msra.mxu0 %v85
    %254 = vmatprep.subr.mxu0 0.0
    %255 = vmatpush1.msra.mxu0 %v86
    %256 = vmatprep.subr.mxu0 0.0
    %257 = vmatpush1.msra.mxu0 %v87
    %258 = vmatprep.subr.mxu0 0.0
    %259 = vmatpush1.msra.mxu0 %v88
    %260 = vmatprep.subr.mxu0 0.0
    %261 = vmatpush1.msra.mxu0 %v89
    %262 = vmatprep.subr.mxu0 0.0
    %263 = vmatpush1.msra.mxu0 %v90
    %264 = vmatprep.subr.mxu0 0.0
    %265 = vmatpush1.msra.mxu0 %v91
    %266 = vmatprep.subr.mxu0 0.0
    %267 = vmatpush1.msra.mxu0 %v92
    %268 = vmatprep.subr.mxu0 0.0
    %269 = vmatpush1.msra.mxu0 %v93
    %270 = vmatprep.subr.mxu0 0.0
    %271 = vmatpush1.msra.mxu0 %v94
    %272 = vmatprep.subr.mxu0 0.0
    %273 = vmatpush1.msra.mxu0 %v95
    %274 = vmatprep.subr.mxu0 0.0
    %275 = vmatpush1.msra.mxu0 %v96
    %276 = vmatprep.subr.mxu0 0.0
    %277 = vmatpush1.msra.mxu0 %v97
    %278 = vmatprep.subr.mxu0 0.0
    %279 = vmatpush1.msra.mxu0 %v98
    %280 = vmatprep.subr.mxu0 0.0
    %281 = vmatpush1.msra.mxu0 %v99
    %282 = vmatprep.subr.mxu0 0.0
    %283 = vmatpush1.msra.mxu0 %v100
    %284 = vmatprep.subr.mxu0 0.0
    %285 = vmatpush1.msra.mxu0 %v101
    %286 = vmatprep.subr.mxu0 0.0
    %287 = vmatpush1.msra.mxu0 %v102
    %288 = vmatprep.subr.mxu0 0.0
    %289 = vmatpush1.msra.mxu0 %v103
    %290 = vmatprep.subr.mxu0 0.0
    %291 = vmatpush1.msra.mxu0 %v104
    %292 = vmatprep.subr.mxu0 0.0
    %293 = vmatpush1.msra.mxu0 %v105
    %294 = vmatprep.subr.mxu0 0.0
    %295 = vmatpush1.msra.mxu0 %v106
    %296 = vmatprep.subr.mxu0 0.0
    %297 = vmatpush1.msra.mxu0 %v107
    %298 = vmatprep.subr.mxu0 0.0
    %299 = vmatpush1.msra.mxu0 %v108
    %300 = vmatprep.subr.mxu0 0.0
    %301 = vmatpush1.msra.mxu0 %v109
    %302 = vmatprep.subr.mxu0 0.0
    %303 = vmatpush1.msra.mxu0 %v110
    %304 = vmatprep.subr.mxu0 0.0
    %305 = vmatpush1.msra.mxu0 %v111
    %306 = vmatprep.subr.mxu0 0.0
    %307 = vmatpush1.msra.mxu0 %v112
    %308 = vmatprep.subr.mxu0 0.0
    %309 = vmatpush1.msra.mxu0 %v113
    %310 = vmatprep.subr.mxu0 0.0
    %311 = vmatpush1.msra.mxu0 %v114
    %312 = vmatprep.subr.mxu0 0.0
    %313 = vmatpush1.msra.mxu0 %v115
    %314 = vmatprep.mubr.f32.mxu0 %v47
    %315 = vmatmul.mubr.f32.gmra.mrb[0].mxu0 %v46
    %v316 = vpop.f32.mrb[0].mxu0
    %v317 = vadd.f32 %v247, %v316
    %v318 = vpop.f32.mrb[0].mxu0
    %319 = vdwg.mxu0
    %320 = vmatprep.subr.mxu0 0.0
    %321 = vmatpush1.msra.mxu0 %v116
    %322 = vmatprep.subr.mxu0 0.0
    %323 = vmatpush1.msra.mxu0 %v117
    %324 = vmatprep.subr.mxu0 0.0
    %325 = vmatpush1.msra.mxu0 %v118
    %326 = vmatprep.subr.mxu0 0.0
    %327 = vmatpush1.msra.mxu0 %v119
    %328 = vmatprep.subr.mxu0 0.0
    %329 = vmatpush1.msra.mxu0 %v120
    %330 = vmatprep.subr.mxu0 0.0
    %331 = vmatpush1.msra.mxu0 %v121
    %332 = vmatprep.subr.mxu0 0.0
    %333 = vmatpush1.msra.mxu0 %v122
    %334 = vmatprep.subr.mxu0 0.0
    %335 = vmatpush1.msra.mxu0 %v123
    %336 = vmatprep.subr.mxu0 0.0
    %337 = vmatpush1.msra.mxu0 %v124
    %338 = vmatprep.subr.mxu0 0.0
    %339 = vmatpush1.msra.mxu0 %v125
    %340 = vmatprep.subr.mxu0 0.0
    %341 = vmatpush1.msra.mxu0 %v126
    %342 = vmatprep.subr.mxu0 0.0
    %343 = vmatpush1.msra.mxu0 %v127
    %344 = vmatprep.subr.mxu0 0.0
    %345 = vmatpush1.msra.mxu0 %v128
    %346 = vmatprep.subr.mxu0 0.0
    %347 = vmatpush1.msra.mxu0 %v129
    %348 = vmatprep.subr.mxu0 0.0
    %349 = vmatpush1.msra.mxu0 %v130
    %350 = vmatprep.subr.mxu0 0.0
    %351 = vmatpush1.msra.mxu0 %v131
    %352 = vmatprep.subr.mxu0 0.0
    %353 = vmatpush1.msra.mxu0 %v132
    %354 = vmatprep.subr.mxu0 0.0
    %355 = vmatpush1.msra.mxu0 %v133
    %356 = vmatprep.subr.mxu0 0.0
    %357 = vmatpush1.msra.mxu0 %v134
    %358 = vmatprep.subr.mxu0 0.0
    %359 = vmatpush1.msra.mxu0 %v135
    %360 = vmatprep.subr.mxu0 0.0
    %361 = vmatpush1.msra.mxu0 %v136
    %362 = vmatprep.subr.mxu0 0.0
    %363 = vmatpush1.msra.mxu0 %v137
    %364 = vmatprep.subr.mxu0 0.0
    %365 = vmatpush1.msra.mxu0 %v138
    %366 = vmatprep.subr.mxu0 0.0
    %367 = vmatpush1.msra.mxu0 %v139
    %368 = vmatprep.subr.mxu0 0.0
    %369 = vmatpush1.msra.mxu0 %v140
    %370 = vmatprep.subr.mxu0 0.0
    %371 = vmatpush1.msra.mxu0 %v141
    %372 = vmatprep.subr.mxu0 0.0
    %373 = vmatpush1.msra.mxu0 %v142
    %374 = vmatprep.subr.mxu0 0.0
    %375 = vmatpush1.msra.mxu0 %v143
    %376 = vmatprep.subr.mxu0 0.0
    %377 = vmatpush1.msra.mxu0 %v144
    %378 = vmatprep.subr.mxu0 0.0
    %379 = vmatpush1.msra.mxu0 %v145
    %380 = vmatprep.subr.mxu0 0.0
    %381 = vmatpush1.msra.mxu0 %v146
    %382 = vmatprep.subr.mxu0 0.0
    %383 = vmatpush1.msra.mxu0 %v147
    %384 = vmatprep.mubr.f32.mxu0 %v49
    %385 = vmatmul.mubr.f32.gmra.mrb[0].mxu0 %v48
    %v386 = vpop.f32.mrb[0].mxu0
    %v387 = vadd.f32 %v317, %v386
    %v388 = vpop.f32.mrb[0].mxu0
    %389 = vdwg.mxu0
    %390 = vmatprep.subr.mxu0 0.0
    %391 = vmatpush1.msra.mxu0 %v148
    %392 = vmatprep.subr.mxu0 0.0
    %393 = vmatpush1.msra.mxu0 %v149
    %394 = vmatprep.subr.mxu0 0.0
    %395 = vmatpush1.msra.mxu0 %v150
    %396 = vmatprep.subr.mxu0 0.0
    %397 = vmatpush1.msra.mxu0 %v151
    %398 = vmatprep.subr.mxu0 0.0
    %399 = vmatpush1.msra.mxu0 %v152
    %400 = vmatprep.subr.mxu0 0.0
    %401 = vmatpush1.msra.mxu0 %v153
    %402 = vmatprep.subr.mxu0 0.0
    %403 = vmatpush1.msra.mxu0 %v154
    %404 = vmatprep.subr.mxu0 0.0
    %405 = vmatpush1.msra.mxu0 %v155
    %406 = vmatprep.subr.mxu0 0.0
    %407 = vmatpush1.msra.mxu0 %v156
    %408 = vmatprep.subr.mxu0 0.0
    %409 = vmatpush1.msra.mxu0 %v157
    %410 = vmatprep.subr.mxu0 0.0
    %411 = vmatpush1.msra.mxu0 %v158
    %412 = vmatprep.subr.mxu0 0.0
    %413 = vmatpush1.msra.mxu0 %v159
    %414 = vmatprep.subr.mxu0 0.0
    %415 = vmatpush1.msra.mxu0 %v160
    %416 = vmatprep.subr.mxu0 0.0
    %417 = vmatpush1.msra.mxu0 %v161
    %418 = vmatprep.subr.mxu0 0.0
    %419 = vmatpush1.msra.mxu0 %v162
    %420 = vmatprep.subr.mxu0 0.0
    %421 = vmatpush1.msra.mxu0 %v163
    %422 = vmatprep.subr.mxu0 0.0
    %423 = vmatpush1.msra.mxu0 %v164
    %424 = vmatprep.subr.mxu0 0.0
    %425 = vmatpush1.msra.mxu0 %v165
    %426 = vmatprep.subr.mxu0 0.0
    %427 = vmatpush1.msra.mxu0 %v166
    %428 = vmatprep.subr.mxu0 0.0
    %429 = vmatpush1.msra.mxu0 %v167
    %430 = vmatprep.subr.mxu0 0.0
    %431 = vmatpush1.msra.mxu0 %v168
    %432 = vmatprep.subr.mxu0 0.0
    %433 = vmatpush1.msra.mxu0 %v169
    %434 = vmatprep.subr.mxu0 0.0
    %435 = vmatpush1.msra.mxu0 %v170
    %436 = vmatprep.subr.mxu0 0.0
    %437 = vmatpush1.msra.mxu0 %v171
    %438 = vmatprep.subr.mxu0 0.0
    %439 = vmatpush1.msra.mxu0 %v172
    %440 = vmatprep.subr.mxu0 0.0
    %441 = vmatpush1.msra.mxu0 %v173
    %442 = vmatprep.subr.mxu0 0.0
    %443 = vmatpush1.msra.mxu0 %v174
    %444 = vmatprep.subr.mxu0 0.0
    %445 = vmatpush1.msra.mxu0 %v175
    %446 = vmatprep.subr.mxu0 0.0
    %447 = vmatpush1.msra.mxu0 %v176
    %448 = vmatprep.subr.mxu0 0.0
    %449 = vmatpush1.msra.mxu0 %v177
    %450 = vmatprep.subr.mxu0 0.0
    %451 = vmatpush1.msra.mxu0 %v178
    %452 = vmatprep.subr.mxu0 0.0
    %453 = vmatpush1.msra.mxu0 %v179
    %454 = vmatprep.mubr.f32.mxu0 %v51
    %455 = vmatmul.mubr.f32.gmra.mrb[0].mxu0 %v50
    %v456 = vpop.f32.mrb[0].mxu0
    %v457 = vadd.f32 %v387, %v456
    %v458 = vpop.f32.mrb[0].mxu0
    %459 = vdwg.mxu0
    %v460 = vld [vmem:[%s2] sm:$0xff]
    %v461 = vld [vmem:[%s3] sm:$0x1]
    %463 = vset.pattern.permute.xlu0 0
    %464 = vperm.xlu0 %463, %v460
    %v465 = vpop.permute.xlu0 %464
    %v468 = vlaneseq
    %v469 = vshrl.u32 %v468, 7
    %v470 = vsub.s32 0, %v469
    %v471 = vrot.slane %v461, %v470
    %v473 = vadd.f32 %v465, %v471
    %v474 = vmul.f32 %v457, 2.0
    %v475 = vsub.f32 %v473, %v474
    %v476 = vmax.f32 %v475, 1e-30
    %v477 = vmul.f32 %v476, -2.0
    %v478 = vmul.f32 %v477, 1.442695
    %v479 = vpow.pop %v478
    %v480 = vmul.f32 %v476, -0.5
    %v481 = vmul.f32 %v480, 1.442695
    %v482 = vpow.pop %v481
    %v483 = vadd.f32 %v479, %v482
    %v484 = vmul.f32 %v476, -0.125
    %v485 = vmul.f32 %v484, 1.442695
    %v486 = vpow.pop %v485
    %v487 = vadd.f32 %v483, %v486
    %v488 = vmul.f32 %v487, 0.33333334
    %489 = vst [vmem:[#allocation7] sm:$0xff] %v488
    // Predicated region
    $region26: #{tpu_custom_call.1} parent=1 // pred_check
      _
    $region27: #{tpu_custom_call.1} parent=1 // pred_check_branch
      %491 = sbr.rel (0) target = $region29
    $region28: #{tpu_custom_call.1} parent=1 // pred_region
      %s493 = ssub.s32 128, 128
      %494 = vsyncadd [#allocation4], %s493
      %s496 = sshll.u32 [#allocation7], 4
      %s497 = int_to_ptr.vmem [resolvable:$true] %s496
      %499 = dma.vmem_to_hbm [thread:$0]  %s497, 128, %s4, [#allocation4]
    $region29: #{tpu_custom_call.1} parent=1 // pred_fallthru
      _
    // Predicated region
    $region30: #{tpu_custom_call.1} parent=1 // pred_check
      _
    $region31: #{tpu_custom_call.1} parent=1 // pred_check_branch
      %501 = sbr.rel (0) target = $region33
    $region32: #{tpu_custom_call.1} parent=1 // pred_region
      %502 = dma.done [#allocation4], 128
    $region33: #{tpu_custom_call.1} parent=1 // pred_fallthru
      _
    %503 = vsyncpa [#allocation3], 1
    %504 = vsyncpa [#allocation6], 1
    %505 = vsyncpa [#allocation4], 1

</llo_original>
